<compile_context>
chip_gen: v7x
topology: tpu7x:2x2x1
jax: 0.10.0
libtpu: 0.0.40
codegen_flags: <defaults>
</compile_context>

<pallas_src>
import jax
import jax.numpy as jnp
from jax.experimental import pallas as pl
from jax.experimental.pallas import tpu as pltpu


def _netvlad_kernel(x_ref, wf_ref, par_ref, out_ref):
    """One grid step: block_n sets -> their normalized (K, C) VLAD descriptors.

    x_ref   : (TN, S, C) f32   descriptors (TN sets of S images each)
    wf_ref  : (2K, C)    bf16  [conv_w ; centroids]  (pre-cast in the wrapper)
    par_ref : (3K, C)    f32   [centroids ; bn_scale ; bn_shift]
    out_ref : (TN, K, C) f32   final VLAD block
    """
    eps = 1e-12            # F.normalize default eps (clamps the norm)
    eps_sq = eps * eps     # rsqrt(max(ssq, eps^2)) == 1 / max(sqrt(ssq), eps)
    tn, s, c = x_ref.shape
    kk = wf_ref.shape[0] // 2
    r = tn * s

    x = x_ref[...]                                                   # (TN, S, C)

    # 1) descriptor-wise L2 normalization over channels (PyTorch dim=1).
    xsq = jnp.sum(x * x, axis=-1, keepdims=True)
    x = x * jax.lax.rsqrt(jnp.maximum(xsq, eps_sq))

    xb = x.reshape(r, c).astype(jnp.bfloat16)                        # MXU operand

    cent = par_ref[0:kk, :]                                          # (K, C) f32
    bn_scale = par_ref[kk:2 * kk, :]                                 # (K, C) f32
    bn_shift = par_ref[2 * kk:3 * kk, :]                             # (K, C) f32

    # 2)+3) one fused MXU matmul against [conv_w ; centroids], produced in the
    #    transposed layout (2K, R): clusters on sublanes, R = TN*S rows on
    #    lanes, so softmax / dist / ssq below all run on lane-dense vregs.
    lw = jax.lax.dot_general(wf_ref[...], xb, (((1,), (1,)), ((), ())),
                             preferred_element_type=jnp.float32)     # (2K, R)
    logits = lw[0:kk, :]                                             # (K, R)
    xc = lw[kk:2 * kk, :]                                            # (K, R) = x . c_k

    # softmax over clusters (sublane axis); exp / reciprocal go to the EUP.
    logits = logits - jnp.max(logits, axis=0, keepdims=True)
    e = jnp.exp(logits)
    assign = e * pl.reciprocal(jnp.sum(e, axis=0, keepdims=True), approx=True)

    # 3-4) residual L2 norm per spatial position without the (S, K, C) tensor:
    #    ssq[r] = sum_k assign[k,r]^2 * ||x_r - c_k||^2, using ||x_r|| == 1
    #    after step 1 (genuine all-zero descriptor rows would deviate, same as
    #    before).  ||c_k||^2 is a tiny grid-invariant reduce on f32 centroids.
    csq = jnp.sum(cent * cent, axis=-1, keepdims=True)               # (K, 1)
    dist = jnp.maximum(1.0 - 2.0 * xc + csq, 0.0)                    # (K, R)
    ssq = jnp.sum(assign * assign * dist, axis=0, keepdims=True)     # (1, R)
    a_scaled = assign * jax.lax.rsqrt(jnp.maximum(ssq, eps_sq))      # (K, R)

    # 5) spatial aggregation as an S-unrolled f32 VPU accumulation:
    #    vlad[n,k,:] = sum_s a'[n,s,k] * x[n,s,:] - (sum_s a'[n,s,k]) * c_k.
    #    Avoids tn tiny 8-deep MXU matmuls and any (R x TN*K) block-diagonal
    #    buffer (VMEM hazard on v7x); a_scaled stays in f32.
    a3 = a_scaled.T.reshape(tn, s, kk)                               # (TN, S, K)
    col = jnp.sum(a3, axis=1)                                        # (TN, K)
    vlad = jnp.zeros((tn, kk, c), jnp.float32)
    for si in range(s):                                              # S static, small
        a_s = a3[:, si, :][:, :, None]                               # (TN, K, 1)
        x_s = x[:, si, :][:, None, :]                                # (TN, 1, C)
        vlad = vlad + a_s * x_s
    vlad = vlad - col[:, :, None] * cent[None, :, :]

    # 6) intra-normalization: L2 over C per cluster (PyTorch dim=2).
    vsq = jnp.sum(vlad * vlad, axis=-1, keepdims=True)
    vlad = vlad * jax.lax.rsqrt(jnp.maximum(vsq, eps_sq))

    # 7) eval-mode BatchNorm1d over K*C features (running stats folded into
    #    per-feature scale/shift) followed by the final L2 normalization.
    v = vlad * bn_scale[None] + bn_shift[None]                       # (TN, K, C)
    n3 = jnp.sum(jnp.sum(v * v, axis=2, keepdims=True), axis=1, keepdims=True)
    out_ref[...] = v * jax.lax.rsqrt(jnp.maximum(n3, eps_sq))


def _num_tensorcores():
    """Best-effort TensorCore count (2 on dual-core parts, 1 on v5e/v6e)."""
    try:
        dev = jax.devices()[0]
        for attr in ("num_cores", "core_count"):
            n = getattr(dev, attr, None)
            if isinstance(n, int) and n > 0:
                return n
    except Exception:
        pass
    return 1


def _default_block_n(n_sets, s):
    # Target ~2048 rows (block_n * S, ~1 MiB f32 x tile) per grid step so the
    # ~0.35 us/step overhead and tiny DMAs stop dominating.  Only force
    # >= num_cores grid steps when the part actually has >1 TensorCore (v7x);
    # on single-core v5e/v6e one big block is strictly better.
    target_rows = 2048
    bn = max(1, min(n_sets, target_rows // max(s, 1)))
    cores = _num_tensorcores()
    if cores > 1:
        bn = max(1, min(bn, pl.cdiv(n_sets, cores)))
    return bn


def netvlad_pallas(x, conv_w, centroids, bn_scale, bn_shift, block_n=None):
    """x: (N, S, C) float32 -> vlad: (N, K*C) float32."""
    N, S, C = x.shape
    K = conv_w.shape[0]
    if block_n is None:
        block_n = _default_block_n(N, S)
    block_n = max(1, min(block_n, N))
    grid_n = pl.cdiv(N, block_n)
    n_pad = grid_n * block_n
    x = x.astype(jnp.float32)
    if n_pad != N:
        # Pad with zero sets; padded rows are computed (no NaNs) and dropped.
        x = jnp.pad(x, ((0, n_pad - N), (0, 0), (0, 0)))

    # Grid-invariant operands, fused & pre-cast in the wrapper (one DMA each).
    wf = jnp.concatenate([conv_w, centroids], axis=0).astype(jnp.bfloat16)   # (2K, C)
    par = jnp.concatenate([centroids, bn_scale, bn_shift],
                          axis=0).astype(jnp.float32)                        # (3K, C)

    out = pl.pallas_call(
        _netvlad_kernel,
        out_shape=jax.ShapeDtypeStruct((n_pad, K, C), jnp.float32),
        grid_spec=pltpu.PrefetchScalarGridSpec(
            num_scalar_prefetch=0,
            grid=(grid_n,),
            in_specs=[
                pl.BlockSpec((block_n, S, C), lambda n: (n, 0, 0)),  # x
                pl.BlockSpec((2 * K, C), lambda n: (0, 0)),          # bf16 [W; cent]
                pl.BlockSpec((3 * K, C), lambda n: (0, 0)),          # f32 [cent; scale; shift]
            ],
            out_specs=pl.BlockSpec((block_n, K, C), lambda n: (n, 0, 0)),
        ),
        compiler_params=pltpu.CompilerParams(
            dimension_semantics=("parallel",),
            vmem_limit_bytes=32 * 1024 * 1024),
    )(x, wf, par)
    return out[:N].reshape(N, K * C)


def init_setnet_params(key, num_clusters=8, dim=128, vlad_dim=128):
    """Deterministic synthetic init mirroring the PyTorch __init__ shapes."""
    assert dim == vlad_dim, "NetVLAD conv requires input channels == vlad_dim"
    k1, k2 = jax.random.split(key)
    # nn.Conv2d(vlad_dim, K, kernel_size=1, bias=False).weight: (K, vlad_dim, 1, 1)
    bound = 1.0 / jnp.sqrt(jnp.float32(vlad_dim))
    conv_w = jax.random.uniform(k1, (num_clusters, vlad_dim), jnp.float32,
                                minval=-bound, maxval=bound)
    # nn.Parameter(torch.rand(K, vlad_dim))
    centroids = jax.random.uniform(k2, (num_clusters, vlad_dim), jnp.float32)
    # nn.BatchNorm1d(K*dim): gamma=1, beta=0, running_mean=0, running_var=1, eps=1e-5
    # (eval-mode batch norm; training mode would use batch statistics)
    eps_bn = 1e-5
    gamma = jnp.ones((num_clusters, dim), jnp.float32)
    beta = jnp.zeros((num_clusters, dim), jnp.float32)
    rmean = jnp.zeros((num_clusters, dim), jnp.float32)
    rvar = jnp.ones((num_clusters, dim), jnp.float32)
    bn_scale = gamma / jnp.sqrt(rvar + eps_bn)
    bn_shift = beta - rmean * bn_scale
    return conv_w, centroids, bn_scale, bn_shift


def setnet_forward(descriptors, m, params):
    """SetNet.forward.

    TODO(synk): the pretrained resnet50_128 base_model (checkpoint-backed CNN)
    has no in-script equivalent; `descriptors` stands in for its (B*m, dim)
    descriptor output `x` right before the view/permute.
    """
    conv_w, centroids, bn_scale, bn_shift = params
    total, dim = descriptors.shape
    B = total // m
    # PyTorch: x.view(B, m, dim).unsqueeze(-1).permute(0, 2, 1, 3) -> NCHW (B, dim, m, 1)
    # Our kernel layout is (N, S, C) = (B, m, dim) (see layout comment above).
    x = descriptors.reshape(B, m, dim).astype(jnp.float32)
    return netvlad_pallas(x, conv_w, centroids, bn_scale, bn_shift)


def _setnet_reference(descriptors, m, params):
    """Pure-JAX f32 reference of the same forward pass (for a sanity check)."""
    conv_w, centroids, bn_scale, bn_shift = params
    eps = 1e-12
    total, dim = descriptors.shape
    B = total // m
    x = descriptors.reshape(B, m, dim).astype(jnp.float32)            # (N, S, C)
    x = x / jnp.maximum(jnp.linalg.norm(x, axis=-1, keepdims=True), eps)
    logits = jnp.einsum("nsc,kc->nsk", x, conv_w)
    assign = jax.nn.softmax(logits, axis=-1)                          # (N, S, K)
    resid = x[:, :, None, :] - centroids[None, None, :, :]            # (N, S, K, C)
    resid = resid * assign[..., None]
    ssq = jnp.sqrt(jnp.sum(resid * resid, axis=(2, 3), keepdims=True))
    resid = resid / jnp.maximum(ssq, eps)
    vlad = jnp.sum(resid, axis=1)                                     # (N, K, C)
    vlad = vlad / jnp.maximum(jnp.linalg.norm(vlad, axis=-1, keepdims=True), eps)
    v = vlad * bn_scale[None] + bn_shift[None]
    v = v.reshape(B, -1)
    return v / jnp.maximum(jnp.linalg.norm(v, axis=-1, keepdims=True), eps)


if __name__ == "__main__":
    key = jax.random.PRNGKey(0)
    k_params, k_data = jax.random.split(key)

    B = 2          # number of sets
    m = 8          # images per set (spatial axis S after the view/permute)
    dim = 128      # descriptor dim of resnet50_128
    K = 8          # num_clusters

    params = init_setnet_params(k_params, num_clusters=K, dim=dim, vlad_dim=dim)
    descriptors = jax.random.normal(k_data, (B * m, dim), jnp.float32)

    v_set = setnet_forward(descriptors, m, params)
    v_set = jax.block_until_ready(v_set)

    assert v_set.shape == (B, K * dim), v_set.shape

    ref = _setnet_reference(descriptors, m, params)
    max_err = float(jnp.max(jnp.abs(v_set - ref)))
    assert max_err < 5e-3, f"mismatch vs reference: {max_err}"

    print("KERNEL_OK")
</pallas_src>

<mosaic_0001>
module attributes {stable_mosaic.version = 11 : i64} {
  func.func @_netvlad_kernel(%arg0: i32, %arg1: memref<2x8x128xf32, #tpu.memory_space<vmem>>, %arg2: memref<16x128xbf16, #tpu.memory_space<vmem>>, %arg3: memref<24x128xf32, #tpu.memory_space<vmem>>, %arg4: memref<2x8x128xf32, #tpu.memory_space<vmem>>) attributes {dimension_semantics = [#tpu.dimension_semantics<parallel>], iteration_bounds = array<i64: 1>, scalar_prefetch = 0 : i64, scratch_operands = 0 : i64, tpu.core_type = #tpu.core_type<tc>, window_params = [{transform_indices = @transform_0, window_bounds = array<i64: 2, 8, 128>}, {pipeline_mode = #tpu.pipeline_mode<synchronous>, transform_indices = @transform_1, window_bounds = array<i64: 16, 128>}, {pipeline_mode = #tpu.pipeline_mode<synchronous>, transform_indices = @transform_2, window_bounds = array<i64: 24, 128>}, {transform_indices = @transform_3, window_bounds = array<i64: 2, 8, 128>}]} {
    %c0 = arith.constant 0 : index
    %c0_0 = arith.constant 0 : index
    %c0_1 = arith.constant 0 : index
    %0 = vector.load %arg1[%c0, %c0_0, %c0_1] : memref<2x8x128xf32, #tpu.memory_space<vmem>>, vector<2x8x128xf32>
    %1 = arith.mulf %0, %0 : vector<2x8x128xf32>
    %cst = arith.constant dense<0.000000e+00> : vector<2x8xf32>
    %2 = vector.multi_reduction <add>, %1, %cst [2] : vector<2x8x128xf32> to vector<2x8xf32>
    %3 = vector.shape_cast %2 : vector<2x8xf32> to vector<2x8x1xf32>
    %cst_2 = arith.constant 1.000000e-24 : f32
    %4 = vector.broadcast %cst_2 : f32 to vector<2x8x1xf32>
    %5 = arith.maximumf %3, %4 : vector<2x8x1xf32>
    %6 = math.rsqrt %5 : vector<2x8x1xf32>
    %7 = vector.broadcast %6 : vector<2x8x1xf32> to vector<2x8x128xf32>
    %8 = arith.mulf %0, %7 : vector<2x8x128xf32>
    %9 = vector.shape_cast %8 : vector<2x8x128xf32> to vector<16x128xf32>
    %10 = arith.truncf %9 : vector<16x128xf32> to vector<16x128xbf16>
    %c0_3 = arith.constant 0 : index
    %c0_4 = arith.constant 0 : index
    %11 = vector.load %arg3[%c0_3, %c0_4] : memref<24x128xf32, #tpu.memory_space<vmem>>, vector<8x128xf32>
    %c8 = arith.constant 8 : index
    %c0_5 = arith.constant 0 : index
    %12 = vector.load %arg3[%c8, %c0_5] : memref<24x128xf32, #tpu.memory_space<vmem>>, vector<8x128xf32>
    %c16 = arith.constant 16 : index
    %c0_6 = arith.constant 0 : index
    %13 = vector.load %arg3[%c16, %c0_6] : memref<24x128xf32, #tpu.memory_space<vmem>>, vector<8x128xf32>
    %c0_7 = arith.constant 0 : index
    %c0_8 = arith.constant 0 : index
    %14 = vector.load %arg2[%c0_7, %c0_8] : memref<16x128xbf16, #tpu.memory_space<vmem>>, vector<16x128xbf16>
    %cst_9 = arith.constant dense<0.000000e+00> : vector<16x16xf32>
    %15 = tpu.matmul %14, %10, %cst_9 {dimension_numbers = #tpu.dot_dimension_numbers<[1], [1], [0], [0], [0, 0, 1, 0], [], []>} : vector<16x128xbf16>, vector<16x128xbf16>, vector<16x16xf32> -> vector<16x16xf32>
    %16 = vector.extract_strided_slice %15 {offsets = [0, 0], sizes = [8, 16], strides = [1, 1]} : vector<16x16xf32> to vector<8x16xf32>
    %17 = vector.extract_strided_slice %15 {offsets = [8, 0], sizes = [8, 16], strides = [1, 1]} : vector<16x16xf32> to vector<8x16xf32>
    %cst_10 = arith.constant dense<0xFF800000> : vector<16xf32>
    %18 = vector.multi_reduction <maximumf>, %16, %cst_10 [0] : vector<8x16xf32> to vector<16xf32>
    %19 = vector.shape_cast %18 : vector<16xf32> to vector<1x16xf32>
    %20 = vector.broadcast %19 : vector<1x16xf32> to vector<8x16xf32>
    %21 = arith.subf %16, %20 : vector<8x16xf32>
    %22 = math.exp %21 : vector<8x16xf32>
    %cst_11 = arith.constant dense<0.000000e+00> : vector<16xf32>
    %23 = vector.multi_reduction <add>, %22, %cst_11 [0] : vector<8x16xf32> to vector<16xf32>
    %24 = vector.shape_cast %23 : vector<16xf32> to vector<1x16xf32>
    %25 = tpu.reciprocal %24 {approx = true} : vector<1x16xf32> -> vector<1x16xf32>
    %26 = vector.broadcast %25 : vector<1x16xf32> to vector<8x16xf32>
    %27 = arith.mulf %22, %26 : vector<8x16xf32>
    %28 = arith.mulf %11, %11 : vector<8x128xf32>
    %cst_12 = arith.constant dense<0.000000e+00> : vector<8xf32>
    %29 = vector.multi_reduction <add>, %28, %cst_12 [1] : vector<8x128xf32> to vector<8xf32>
    %30 = vector.shape_cast %29 : vector<8xf32> to vector<8x1xf32>
    %cst_13 = arith.constant 2.000000e+00 : f32
    %31 = vector.broadcast %cst_13 : f32 to vector<8x16xf32>
    %32 = arith.mulf %31, %17 : vector<8x16xf32>
    %cst_14 = arith.constant 1.000000e+00 : f32
    %33 = vector.broadcast %cst_14 : f32 to vector<8x16xf32>
    %34 = arith.subf %33, %32 : vector<8x16xf32>
    %35 = vector.broadcast %30 : vector<8x1xf32> to vector<8x16xf32>
    %36 = arith.addf %34, %35 : vector<8x16xf32>
    %cst_15 = arith.constant 0.000000e+00 : f32
    %37 = vector.broadcast %cst_15 : f32 to vector<8x16xf32>
    %38 = arith.maximumf %36, %37 : vector<8x16xf32>
    %39 = arith.mulf %27, %27 : vector<8x16xf32>
    %40 = arith.mulf %39, %38 : vector<8x16xf32>
    %cst_16 = arith.constant dense<0.000000e+00> : vector<16xf32>
    %41 = vector.multi_reduction <add>, %40, %cst_16 [0] : vector<8x16xf32> to vector<16xf32>
    %42 = vector.shape_cast %41 : vector<16xf32> to vector<1x16xf32>
    %cst_17 = arith.constant 1.000000e-24 : f32
    %43 = vector.broadcast %cst_17 : f32 to vector<1x16xf32>
    %44 = arith.maximumf %42, %43 : vector<1x16xf32>
    %45 = math.rsqrt %44 : vector<1x16xf32>
    %46 = vector.broadcast %45 : vector<1x16xf32> to vector<8x16xf32>
    %47 = arith.mulf %27, %46 : vector<8x16xf32>
    %48 = tpu.transpose %47, [1, 0] : vector<8x16xf32> -> vector<16x8xf32>
    %49 = vector.shape_cast %48 : vector<16x8xf32> to vector<2x8x8xf32>
    %cst_18 = arith.constant dense<0.000000e+00> : vector<2x8xf32>
    %50 = vector.multi_reduction <add>, %49, %cst_18 [1] : vector<2x8x8xf32> to vector<2x8xf32>
    %cst_19 = arith.constant 0.000000e+00 : f32
    %51 = vector.broadcast %cst_19 : f32 to vector<2x8x128xf32>
    %52 = vector.extract_strided_slice %49 {offsets = [0, 0, 0], sizes = [2, 1, 8], strides = [1, 1, 1]} : vector<2x8x8xf32> to vector<2x1x8xf32>
    %53 = vector.shape_cast %52 : vector<2x1x8xf32> to vector<2x8xf32>
    %54 = vector.shape_cast %53 : vector<2x8xf32> to vector<2x8x1xf32>
    %55 = vector.extract_strided_slice %8 {offsets = [0, 0, 0], sizes = [2, 1, 128], strides = [1, 1, 1]} : vector<2x8x128xf32> to vector<2x1x128xf32>
    %56 = vector.shape_cast %55 : vector<2x1x128xf32> to vector<2x128xf32>
    %57 = vector.shape_cast %56 : vector<2x128xf32> to vector<2x1x128xf32>
    %58 = vector.broadcast %54 : vector<2x8x1xf32> to vector<2x8x128xf32>
    %59 = vector.broadcast %57 : vector<2x1x128xf32> to vector<2x8x128xf32>
    %60 = arith.mulf %58, %59 : vector<2x8x128xf32>
    %61 = arith.addf %51, %60 : vector<2x8x128xf32>
    %62 = vector.extract_strided_slice %49 {offsets = [0, 1, 0], sizes = [2, 1, 8], strides = [1, 1, 1]} : vector<2x8x8xf32> to vector<2x1x8xf32>
    %63 = vector.shape_cast %62 : vector<2x1x8xf32> to vector<2x8xf32>
    %64 = vector.shape_cast %63 : vector<2x8xf32> to vector<2x8x1xf32>
    %65 = vector.extract_strided_slice %8 {offsets = [0, 1, 0], sizes = [2, 1, 128], strides = [1, 1, 1]} : vector<2x8x128xf32> to vector<2x1x128xf32>
    %66 = vector.shape_cast %65 : vector<2x1x128xf32> to vector<2x128xf32>
    %67 = vector.shape_cast %66 : vector<2x128xf32> to vector<2x1x128xf32>
    %68 = vector.broadcast %64 : vector<2x8x1xf32> to vector<2x8x128xf32>
    %69 = vector.broadcast %67 : vector<2x1x128xf32> to vector<2x8x128xf32>
    %70 = arith.mulf %68, %69 : vector<2x8x128xf32>
    %71 = arith.addf %61, %70 : vector<2x8x128xf32>
    %72 = vector.extract_strided_slice %49 {offsets = [0, 2, 0], sizes = [2, 1, 8], strides = [1, 1, 1]} : vector<2x8x8xf32> to vector<2x1x8xf32>
    %73 = vector.shape_cast %72 : vector<2x1x8xf32> to vector<2x8xf32>
    %74 = vector.shape_cast %73 : vector<2x8xf32> to vector<2x8x1xf32>
    %75 = vector.extract_strided_slice %8 {offsets = [0, 2, 0], sizes = [2, 1, 128], strides = [1, 1, 1]} : vector<2x8x128xf32> to vector<2x1x128xf32>
    %76 = vector.shape_cast %75 : vector<2x1x128xf32> to vector<2x128xf32>
    %77 = vector.shape_cast %76 : vector<2x128xf32> to vector<2x1x128xf32>
    %78 = vector.broadcast %74 : vector<2x8x1xf32> to vector<2x8x128xf32>
    %79 = vector.broadcast %77 : vector<2x1x128xf32> to vector<2x8x128xf32>
    %80 = arith.mulf %78, %79 : vector<2x8x128xf32>
    %81 = arith.addf %71, %80 : vector<2x8x128xf32>
    %82 = vector.extract_strided_slice %49 {offsets = [0, 3, 0], sizes = [2, 1, 8], strides = [1, 1, 1]} : vector<2x8x8xf32> to vector<2x1x8xf32>
    %83 = vector.shape_cast %82 : vector<2x1x8xf32> to vector<2x8xf32>
    %84 = vector.shape_cast %83 : vector<2x8xf32> to vector<2x8x1xf32>
    %85 = vector.extract_strided_slice %8 {offsets = [0, 3, 0], sizes = [2, 1, 128], strides = [1, 1, 1]} : vector<2x8x128xf32> to vector<2x1x128xf32>
    %86 = vector.shape_cast %85 : vector<2x1x128xf32> to vector<2x128xf32>
    %87 = vector.shape_cast %86 : vector<2x128xf32> to vector<2x1x128xf32>
    %88 = vector.broadcast %84 : vector<2x8x1xf32> to vector<2x8x128xf32>
    %89 = vector.broadcast %87 : vector<2x1x128xf32> to vector<2x8x128xf32>
    %90 = arith.mulf %88, %89 : vector<2x8x128xf32>
    %91 = arith.addf %81, %90 : vector<2x8x128xf32>
    %92 = vector.extract_strided_slice %49 {offsets = [0, 4, 0], sizes = [2, 1, 8], strides = [1, 1, 1]} : vector<2x8x8xf32> to vector<2x1x8xf32>
    %93 = vector.shape_cast %92 : vector<2x1x8xf32> to vector<2x8xf32>
    %94 = vector.shape_cast %93 : vector<2x8xf32> to vector<2x8x1xf32>
    %95 = vector.extract_strided_slice %8 {offsets = [0, 4, 0], sizes = [2, 1, 128], strides = [1, 1, 1]} : vector<2x8x128xf32> to vector<2x1x128xf32>
    %96 = vector.shape_cast %95 : vector<2x1x128xf32> to vector<2x128xf32>
    %97 = vector.shape_cast %96 : vector<2x128xf32> to vector<2x1x128xf32>
    %98 = vector.broadcast %94 : vector<2x8x1xf32> to vector<2x8x128xf32>
    %99 = vector.broadcast %97 : vector<2x1x128xf32> to vector<2x8x128xf32>
    %100 = arith.mulf %98, %99 : vector<2x8x128xf32>
    %101 = arith.addf %91, %100 : vector<2x8x128xf32>
    %102 = vector.extract_strided_slice %49 {offsets = [0, 5, 0], sizes = [2, 1, 8], strides = [1, 1, 1]} : vector<2x8x8xf32> to vector<2x1x8xf32>
    %103 = vector.shape_cast %102 : vector<2x1x8xf32> to vector<2x8xf32>
    %104 = vector.shape_cast %103 : vector<2x8xf32> to vector<2x8x1xf32>
    %105 = vector.extract_strided_slice %8 {offsets = [0, 5, 0], sizes = [2, 1, 128], strides = [1, 1, 1]} : vector<2x8x128xf32> to vector<2x1x128xf32>
    %106 = vector.shape_cast %105 : vector<2x1x128xf32> to vector<2x128xf32>
    %107 = vector.shape_cast %106 : vector<2x128xf32> to vector<2x1x128xf32>
    %108 = vector.broadcast %104 : vector<2x8x1xf32> to vector<2x8x128xf32>
    %109 = vector.broadcast %107 : vector<2x1x128xf32> to vector<2x8x128xf32>
    %110 = arith.mulf %108, %109 : vector<2x8x128xf32>
    %111 = arith.addf %101, %110 : vector<2x8x128xf32>
    %112 = vector.extract_strided_slice %49 {offsets = [0, 6, 0], sizes = [2, 1, 8], strides = [1, 1, 1]} : vector<2x8x8xf32> to vector<2x1x8xf32>
    %113 = vector.shape_cast %112 : vector<2x1x8xf32> to vector<2x8xf32>
    %114 = vector.shape_cast %113 : vector<2x8xf32> to vector<2x8x1xf32>
    %115 = vector.extract_strided_slice %8 {offsets = [0, 6, 0], sizes = [2, 1, 128], strides = [1, 1, 1]} : vector<2x8x128xf32> to vector<2x1x128xf32>
    %116 = vector.shape_cast %115 : vector<2x1x128xf32> to vector<2x128xf32>
    %117 = vector.shape_cast %116 : vector<2x128xf32> to vector<2x1x128xf32>
    %118 = vector.broadcast %114 : vector<2x8x1xf32> to vector<2x8x128xf32>
    %119 = vector.broadcast %117 : vector<2x1x128xf32> to vector<2x8x128xf32>
    %120 = arith.mulf %118, %119 : vector<2x8x128xf32>
    %121 = arith.addf %111, %120 : vector<2x8x128xf32>
    %122 = vector.extract_strided_slice %49 {offsets = [0, 7, 0], sizes = [2, 1, 8], strides = [1, 1, 1]} : vector<2x8x8xf32> to vector<2x1x8xf32>
    %123 = vector.shape_cast %122 : vector<2x1x8xf32> to vector<2x8xf32>
    %124 = vector.shape_cast %123 : vector<2x8xf32> to vector<2x8x1xf32>
    %125 = vector.extract_strided_slice %8 {offsets = [0, 7, 0], sizes = [2, 1, 128], strides = [1, 1, 1]} : vector<2x8x128xf32> to vector<2x1x128xf32>
    %126 = vector.shape_cast %125 : vector<2x1x128xf32> to vector<2x128xf32>
    %127 = vector.shape_cast %126 : vector<2x128xf32> to vector<2x1x128xf32>
    %128 = vector.broadcast %124 : vector<2x8x1xf32> to vector<2x8x128xf32>
    %129 = vector.broadcast %127 : vector<2x1x128xf32> to vector<2x8x128xf32>
    %130 = arith.mulf %128, %129 : vector<2x8x128xf32>
    %131 = arith.addf %121, %130 : vector<2x8x128xf32>
    %132 = vector.shape_cast %50 : vector<2x8xf32> to vector<2x8x1xf32>
    %133 = vector.shape_cast %11 : vector<8x128xf32> to vector<1x8x128xf32>
    %134 = vector.broadcast %132 : vector<2x8x1xf32> to vector<2x8x128xf32>
    %135 = vector.broadcast %133 : vector<1x8x128xf32> to vector<2x8x128xf32>
    %136 = arith.mulf %134, %135 : vector<2x8x128xf32>
    %137 = arith.subf %131, %136 : vector<2x8x128xf32>
    %138 = arith.mulf %137, %137 : vector<2x8x128xf32>
    %cst_20 = arith.constant dense<0.000000e+00> : vector<2x8xf32>
    %139 = vector.multi_reduction <add>, %138, %cst_20 [2] : vector<2x8x128xf32> to vector<2x8xf32>
    %140 = vector.shape_cast %139 : vector<2x8xf32> to vector<2x8x1xf32>
    %cst_21 = arith.constant 1.000000e-24 : f32
    %141 = vector.broadcast %cst_21 : f32 to vector<2x8x1xf32>
    %142 = arith.maximumf %140, %141 : vector<2x8x1xf32>
    %143 = math.rsqrt %142 : vector<2x8x1xf32>
    %144 = vector.broadcast %143 : vector<2x8x1xf32> to vector<2x8x128xf32>
    %145 = arith.mulf %137, %144 : vector<2x8x128xf32>
    %146 = vector.shape_cast %12 : vector<8x128xf32> to vector<1x8x128xf32>
    %147 = vector.broadcast %146 : vector<1x8x128xf32> to vector<2x8x128xf32>
    %148 = arith.mulf %145, %147 : vector<2x8x128xf32>
    %149 = vector.shape_cast %13 : vector<8x128xf32> to vector<1x8x128xf32>
    %150 = vector.broadcast %149 : vector<1x8x128xf32> to vector<2x8x128xf32>
    %151 = arith.addf %148, %150 : vector<2x8x128xf32>
    %152 = arith.mulf %151, %151 : vector<2x8x128xf32>
    %cst_22 = arith.constant dense<0.000000e+00> : vector<2x8xf32>
    %153 = vector.multi_reduction <add>, %152, %cst_22 [2] : vector<2x8x128xf32> to vector<2x8xf32>
    %154 = vector.shape_cast %153 : vector<2x8xf32> to vector<2x8x1xf32>
    %cst_23 = arith.constant dense<0.000000e+00> : vector<2x1xf32>
    %155 = vector.multi_reduction <add>, %154, %cst_23 [1] : vector<2x8x1xf32> to vector<2x1xf32>
    %156 = vector.shape_cast %155 : vector<2x1xf32> to vector<2x1x1xf32>
    %cst_24 = arith.constant 1.000000e-24 : f32
    %157 = vector.broadcast %cst_24 : f32 to vector<2x1x1xf32>
    %158 = arith.maximumf %156, %157 : vector<2x1x1xf32>
    %159 = math.rsqrt %158 : vector<2x1x1xf32>
    %160 = vector.broadcast %159 : vector<2x1x1xf32> to vector<2x8x128xf32>
    %161 = arith.mulf %151, %160 : vector<2x8x128xf32>
    %c0_25 = arith.constant 0 : index
    %c0_26 = arith.constant 0 : index
    %c0_27 = arith.constant 0 : index
    %162 = vector.load %arg4[%c0_25, %c0_26, %c0_27] : memref<2x8x128xf32, #tpu.memory_space<vmem>>, vector<2x8x128xf32>
    tpu.vector_store %arg4[%c0_25, %c0_26, %c0_27], %161 {strides = array<i32>} : memref<2x8x128xf32, #tpu.memory_space<vmem>>, vector<2x8x128xf32>,
    return
  }
  func.func @transform_0(%arg0: i32) -> (i32, i32, i32) {
    %c0_i32 = arith.constant 0 : i32
    %c0_i32_0 = arith.constant 0 : i32
    %c0_i32_1 = arith.constant 0 : i32
    return %arg0, %c0_i32, %c0_i32_0 : i32, i32, i32
  }
  func.func @transform_1(%arg0: i32) -> (i32, i32) {
    %c0_i32 = arith.constant 0 : i32
    %c0_i32_0 = arith.constant 0 : i32
    %c0_i32_1 = arith.constant 0 : i32
    return %c0_i32, %c0_i32_0 : i32, i32
  }
  func.func @transform_2(%arg0: i32) -> (i32, i32) {
    %c0_i32 = arith.constant 0 : i32
    %c0_i32_0 = arith.constant 0 : i32
    %c0_i32_1 = arith.constant 0 : i32
    return %c0_i32, %c0_i32_0 : i32, i32
  }
  func.func @transform_3(%arg0: i32) -> (i32, i32, i32) {
    %c0_i32 = arith.constant 0 : i32
    %c0_i32_0 = arith.constant 0 : i32
    %c0_i32_1 = arith.constant 0 : i32
    return %arg0, %c0_i32, %c0_i32_0 : i32, i32, i32
  }
}

</mosaic_0001>

<llo_original>
// kernel: tpu_custom_call.1
$region0: #{tpu_custom_call.1}
  #allocation0 [shape = 'u32[]', space=smem, size = 0x4, offset = 0x4, fixed_abs, tag = 'smem constant byte address 0x4 - core index']
  #allocation1 [shape = 'u32[144,128]{1,0:T(1,128)}', space=vmem, size = 0x12000, scoped, tag = 'internal scratch']
  %s0 = inlined_call_operand.hbm [shape: f32[2,8,128], index: 0, kind: input, shape index: {}]
  %s1 = inlined_call_operand.hbm [shape: bf16[16,128], index: 1, kind: input, shape index: {}]
  %s2 = inlined_call_operand.hbm [shape: f32[24,128], index: 2, kind: input, shape index: {}]
  %s3 = inlined_call_operand.hbm [shape: f32[2,8,128], index: 3, kind: output, shape index: {}]
  %s4 = sld [smem:[#allocation0]]
  $region34: #{tpu_custom_call.1} parent=0
    _
  %s6 = ssub.s32 1, %s4
  %s7 = scalar_select 0, %s6, %s4
  $region1: #{tpu_custom_call.1} parent=0
    #allocation2 [shape = 'u8[8192]{0}', space=vmem, size = 0x2000, scoped, tag = 'input window, operand 0, single buffered']
    #allocation3 [shape = 's32[1]{0}', space=sflag, size = 0x4, scoped, tag = 'scoped memory for tpu_custom_call.1']
    #allocation4 [shape = 's32[1]{0}', space=sflag, size = 0x4, scoped, tag = 'scoped memory for tpu_custom_call.1']
    #allocation5 [shape = 'u8[4096]{0}', space=vmem, size = 0x1000, scoped, tag = 'input window, operand 1, single buffered']
    #allocation6 [shape = 's32[1]{0}', space=sflag, size = 0x4, scoped, tag = 'scoped memory for tpu_custom_call.1']
    #allocation7 [shape = 'u8[12288]{0}', space=vmem, size = 0x3000, scoped, tag = 'input window, operand 2, single buffered']
    #allocation8 [shape = 'u8[8192]{0}', space=vmem, size = 0x2000, scoped, tag = 'output window, operand 0, single buffered']
    %8 = vsyncpa [#allocation3], 0
    %9 = vsyncpa [#allocation6], 0
    %10 = vsyncpa [#allocation4], 0
    // Predicated region
    $region2: #{tpu_custom_call.1} parent=1 // pred_check
      _
    $region3: #{tpu_custom_call.1} parent=1 // pred_check_branch
      %12 = sbr.rel (0) target = $region5
    $region4: #{tpu_custom_call.1} parent=1 // pred_region
      %s14 = ssub.s32 256, 256
      %15 = vsyncadd [#allocation3], %s14
      %s16 = sshll.u32 [#allocation2], 4
      %s17 = int_to_ptr.vmem [resolvable:$true] %s16
      %22 = dma.hbm_to_vmem [thread:$0]  %s0, 256, %s17, [#allocation3], 128, 128, 8
    $region5: #{tpu_custom_call.1} parent=1 // pred_fallthru
      _
    // Predicated region
    $region6: #{tpu_custom_call.1} parent=1 // pred_check
      _
    $region7: #{tpu_custom_call.1} parent=1 // pred_check_branch
      %24 = sbr.rel (0) target = $region9
    $region8: #{tpu_custom_call.1} parent=1 // pred_region
      %s26 = ssub.s32 128, 128
      %27 = vsyncadd [#allocation6], %s26
      %s28 = sshll.u32 [#allocation5], 4
      %s29 = int_to_ptr.vmem [resolvable:$true] %s28
      %34 = dma.hbm_to_vmem [thread:$0]  %s1, 128, %s29, [#allocation6], 64, 64, 4
    $region9: #{tpu_custom_call.1} parent=1 // pred_fallthru
      _
    // Predicated region
    $region10: #{tpu_custom_call.1} parent=1 // pred_check
      _
    $region11: #{tpu_custom_call.1} parent=1 // pred_check_branch
      %36 = sbr.rel (0) target = $region13
    $region12: #{tpu_custom_call.1} parent=1 // pred_region
      %s38 = ssub.s32 384, 384
      %39 = vsyncadd [#allocation6], %s38
      %s40 = sshll.u32 [#allocation7], 4
      %s41 = int_to_ptr.vmem [resolvable:$true] %s40
      %46 = dma.hbm_to_vmem [thread:$0]  %s2, 384, %s41, [#allocation6], 128, 128, 8
    $region13: #{tpu_custom_call.1} parent=1 // pred_fallthru
      _
    // Predicated region
    $region14: #{tpu_custom_call.1} parent=1 // pred_check
      _
    $region15: #{tpu_custom_call.1} parent=1 // pred_check_branch
      %48 = sbr.rel (0) target = $region17
    $region16: #{tpu_custom_call.1} parent=1 // pred_region
      %49 = dma.done [#allocation3], 256
    $region17: #{tpu_custom_call.1} parent=1 // pred_fallthru
      _
    // Predicated region
    $region18: #{tpu_custom_call.1} parent=1 // pred_check
      _
    $region19: #{tpu_custom_call.1} parent=1 // pred_check_branch
      %51 = sbr.rel (0) target = $region21
    $region20: #{tpu_custom_call.1} parent=1 // pred_region
      %52 = dma.done [#allocation6], 128
    $region21: #{tpu_custom_call.1} parent=1 // pred_fallthru
      _
    // Predicated region
    $region22: #{tpu_custom_call.1} parent=1 // pred_check
      _
    $region23: #{tpu_custom_call.1} parent=1 // pred_check_branch
      %54 = sbr.rel (0) target = $region25
    $region24: #{tpu_custom_call.1} parent=1 // pred_region
      %55 = dma.done [#allocation6], 384
    $region25: #{tpu_custom_call.1} parent=1 // pred_fallthru
      _
    %v57 = vld [vmem:[#allocation2] sm:$0xff]
    %v58 = vld [vmem:[#allocation2 + $0x8] sm:$0xff]
    %v59 = vmul.f32 %v57, %v57
    %v60 = vmul.f32 %v58, %v58
    %61 = vadd.xlane.f32.xlu0 %v59
    %v62 = vpop.xlane.xlu0 %61
    %63 = vadd.xlane.f32.xlu0 %v60
    %v64 = vpop.xlane.xlu0 %63
    %v65 = vmax.f32 %v62, 1e-24
    %v66 = vmax.f32 %v64, 1e-24
    %v67 = vrsqrt.pop %v65
    %v68 = vrsqrt.pop %v66
    %v69 = vmul.f32 %v57, %v67
    %v70 = vmul.f32 %v58, %v68
    %v71 = vpack.c.bf16 %v70, %v69
    %v72 = vld [vmem:[#allocation7] sm:$0xff]
    %v73 = vld [vmem:[#allocation7 + $0x8] sm:$0xff]
    %v74 = vld [vmem:[#allocation7 + $0x10] sm:$0xff]
    %v75 = vld [vmem:[#allocation5] sm:$0xf]
    %v76 = vld [vmem:[#allocation5 + $0x4] sm:$0xf]
    %v79 = vunpack.c.l.b16 %v75
    %v80 = vunpack.c.l.b16 %v76
    %v81 = vpack.c.b16 %v80, %v79
    %83 = vmatprep.subr.bf16.mxu0 0
    %84 = vmatpush1.bf16.xpose.msra.mxu0 %v71
    %85 = vmatprep.subr.bf16.mxu0 0
    %86 = vmatpush1.bf16.xpose.msra.mxu0 0
    %87 = vmatprep.subr.bf16.mxu0 0
    %88 = vmatpush1.bf16.xpose.msra.mxu0 0
    %89 = vmatprep.subr.bf16.mxu0 0
    %90 = vmatpush1.bf16.xpose.msra.mxu0 0
    %91 = vmatprep.subr.bf16.mxu0 0
    %92 = vmatpush1.bf16.xpose.msra.mxu0 0
    %93 = vmatprep.subr.bf16.mxu0 0
    %94 = vmatpush1.bf16.xpose.msra.mxu0 0
    %95 = vmatprep.subr.bf16.mxu0 0
    %96 = vmatpush1.bf16.xpose.msra.mxu0 0
    %97 = vmatprep.subr.bf16.mxu0 0
    %98 = vmatpush1.bf16.xpose.msra.mxu0 0
    %99 = vmatprep.subr.bf16.mxu0 0
    %100 = vmatpush1.bf16.xpose.msra.mxu0 0
    %101 = vmatprep.subr.bf16.mxu0 0
    %102 = vmatpush1.bf16.xpose.msra.mxu0 0
    %103 = vmatprep.subr.bf16.mxu0 0
    %104 = vmatpush1.bf16.xpose.msra.mxu0 0
    %105 = vmatprep.subr.bf16.mxu0 0
    %106 = vmatpush1.bf16.xpose.msra.mxu0 0
    %107 = vmatprep.subr.bf16.mxu0 0
    %108 = vmatpush1.bf16.xpose.msra.mxu0 0
    %109 = vmatprep.subr.bf16.mxu0 0
    %110 = vmatpush1.bf16.xpose.msra.mxu0 0
    %111 = vmatprep.subr.bf16.mxu0 0
    %112 = vmatpush1.bf16.xpose.msra.mxu0 0
    %113 = vmatprep.subr.bf16.mxu0 0
    %114 = vmatpush1.bf16.xpose.msra.mxu0 0
    %115 = vmatprep.mubr.bf16.mxu0 0
    %116 = vmatmul.mubr.bf16.gmra.mrb[0].mxu0 %v81
    %v117 = vpop.f32.mrb[0].mxu0
    %v118 = vadd.f32 0.0, %v117
    %v119 = vpop.f32.mrb[0].mxu0
    %v120 = vpop.f32.mrb[0].mxu0
    %v121 = vadd.f32 0.0, %v120
    %v122 = vpop.f32.mrb[0].mxu0
    %123 = vdwg.mxu0
    %vm124 = vcmask 130048
    %v125 = vsel %vm124, %v118, -inf
    %v126 = vrot.slane %v125, 4
    %v127 = vmax.f32 %v125, %v126
    %v128 = vrot.slane %v127, 2
    %v129 = vmax.f32 %v127, %v128
    %v130 = vrot.slane %v129, 1
    %v131 = vmax.f32 %v129, %v130
    %v132 = vsub.f32 %v118, %v131
    %v133 = vmul.f32 %v132, 1.442695
    %v134 = vpow.pop %v133
    %v135 = vsel %vm124, %v134, 0.0
    %v136 = vrot.slane %v135, 4
    %v137 = vadd.f32 %v135, %v136
    %v138 = vrot.slane %v137, 2
    %v139 = vadd.f32 %v137, %v138
    %v140 = vrot.slane %v139, 1
    %v141 = vadd.f32 %v139, %v140
    %v142 = vrcp.pop %v141
    %v143 = vmul.f32 %v134, %v142
    %v144 = vmul.f32 %v72, %v72
    %145 = vadd.xlane.f32.xlu0 %v144
    %v146 = vpop.xlane.xlu0 %145
    %v147 = vmul.f32 %v121, 2.0
    %v148 = vsub.f32 1.0, %v147
    %v149 = vadd.f32 %v148, %v146
    %v150 = vmax.f32 %v149, 0.0
    %v151 = vmul.f32 %v143, %v143
    %v152 = vmul.f32 %v151, %v150
    %v153 = vsel %vm124, %v152, 0.0
    %v154 = vrot.slane %v153, 4
    %v155 = vadd.f32 %v153, %v154
    %v156 = vrot.slane %v155, 2
    %v157 = vadd.f32 %v155, %v156
    %v158 = vrot.slane %v157, 1
    %v159 = vadd.f32 %v157, %v158
    %v160 = vmax.f32 %v159, 1e-24
    %v161 = vrsqrt.pop %v160
    %v162 = vmul.f32 %v143, %v161
    %163 = vxpose.xlu0.b32.start [1/16] %v162, 128
    %164 = vxpose.xlu0.b32.cont [2/16] 0.0, 128
    %165 = vxpose.xlu0.b32.cont [3/16] 0.0, 128
    %166 = vxpose.xlu0.b32.cont [4/16] 0.0, 128
    %167 = vxpose.xlu0.b32.cont [5/16] 0.0, 128
    %168 = vxpose.xlu0.b32.cont [6/16] 0.0, 128
    %169 = vxpose.xlu0.b32.cont [7/16] 0.0, 128
    %170 = vxpose.xlu0.b32.cont [8/16] 0.0, 128
    %171 = vxpose.xlu0.b32.cont [9/16] 0.0, 128
    %172 = vxpose.xlu0.b32.cont [10/16] 0.0, 128
    %173 = vxpose.xlu0.b32.cont [11/16] 0.0, 128
    %174 = vxpose.xlu0.b32.cont [12/16] 0.0, 128
    %175 = vxpose.xlu0.b32.cont [13/16] 0.0, 128
    %176 = vxpose.xlu0.b32.cont [14/16] 0.0, 128
    %177 = vxpose.xlu0.b32.cont [15/16] 0.0, 128
    %178 = vxpose.xlu0.b32.end [16/16] 0.0, 128
    %v179 = vpop.trf.xlu0
    %v180 = vpop.trf.xlu0
    %v181 = vpop.trf.xlu0
    %v182 = vpop.trf.xlu0
    %v183 = vpop.trf.xlu0
    %v184 = vpop.trf.xlu0
    %v185 = vpop.trf.xlu0
    %v186 = vpop.trf.xlu0
    %v187 = vpop.trf.xlu0
    %v188 = vpop.trf.xlu0
    %v189 = vpop.trf.xlu0
    %v190 = vpop.trf.xlu0
    %v191 = vpop.trf.xlu0
    %v192 = vpop.trf.xlu0
    %v193 = vpop.trf.xlu0
    %v194 = vpop.trf.xlu0
    %vm195 = vcmask 64512
    %v196 = vsel %vm195, %v179, 0.0
    %v197 = vrot.slane %v196, 4
    %v198 = vadd.f32 %v196, %v197
    %v199 = vrot.slane %v198, 2
    %v200 = vadd.f32 %v198, %v199
    %v201 = vrot.slane %v200, 1
    %v202 = vadd.f32 %v200, %v201
    %v203 = vsel %vm195, %v180, 0.0
    %v204 = vrot.slane %v203, 4
    %v205 = vadd.f32 %v203, %v204
    %v206 = vrot.slane %v205, 2
    %v207 = vadd.f32 %v205, %v206
    %v208 = vrot.slane %v207, 1
    %v209 = vadd.f32 %v207, %v208
    %v210 = vlaneseq
    %v211 = vshrl.u32 %v210, 7
    %v212 = vsub.s32 0, %v211
    %v213 = vrot.slane %v179, %v212
    %215 = vbcast.lane.b32.xlu0 %v213, 256
    %v216 = vpop.permute.xlu0 %215
    %v217 = vlaneseq
    %v218 = vshrl.u32 %v217, 7
    %v219 = vsub.s32 0, %v218
    %v220 = vrot.slane %v180, %v219
    %222 = vbcast.lane.b32.xlu0 %v220, 256
    %v223 = vpop.permute.xlu0 %222
    %v224 = vlaneseq
    %v225 = vshrl.u32 %v224, 7
    %v226 = vsub.s32 0, %v225
    %v227 = vrot.slane %v69, %v226
    %v228 = vlaneseq
    %v229 = vshrl.u32 %v228, 7
    %v230 = vsub.s32 0, %v229
    %v231 = vrot.slane %v70, %v230
    %v232 = vmul.f32 %v216, %v227
    %v233 = vmul.f32 %v223, %v231
    %v234 = vadd.f32 %v232, 0.0
    %v235 = vadd.f32 %v233, 0.0
    %v236 = vlaneseq
    %v237 = vshrl.u32 %v236, 7
    %v238 = vsub.s32 1, %v237
    %v239 = vrot.slane %v179, %v238
    %241 = vbcast.lane.b32.xlu0 %v239, 256
    %v242 = vpop.permute.xlu0 %241
    %v243 = vlaneseq
    %v244 = vshrl.u32 %v243, 7
    %v245 = vsub.s32 1, %v244
    %v246 = vrot.slane %v180, %v245
    %248 = vbcast.lane.b32.xlu0 %v246, 256
    %v249 = vpop.permute.xlu0 %248
    %v250 = vlaneseq
    %v251 = vshrl.u32 %v250, 7
    %v252 = vsub.s32 1, %v251
    %v253 = vrot.slane %v69, %v252
    %v254 = vlaneseq
    %v255 = vshrl.u32 %v254, 7
    %v256 = vsub.s32 1, %v255
    %v257 = vrot.slane %v70, %v256
    %v258 = vmul.f32 %v242, %v253
    %v259 = vmul.f32 %v249, %v257
    %v260 = vadd.f32 %v234, %v258
    %v261 = vadd.f32 %v235, %v259
    %v262 = vlaneseq
    %v263 = vshrl.u32 %v262, 7
    %v264 = vsub.s32 2, %v263
    %v265 = vrot.slane %v179, %v264
    %267 = vbcast.lane.b32.xlu0 %v265, 256
    %v268 = vpop.permute.xlu0 %267
    %v269 = vlaneseq
    %v270 = vshrl.u32 %v269, 7
    %v271 = vsub.s32 2, %v270
    %v272 = vrot.slane %v180, %v271
    %274 = vbcast.lane.b32.xlu0 %v272, 256
    %v275 = vpop.permute.xlu0 %274
    %v276 = vlaneseq
    %v277 = vshrl.u32 %v276, 7
    %v278 = vsub.s32 2, %v277
    %v279 = vrot.slane %v69, %v278
    %v280 = vlaneseq
    %v281 = vshrl.u32 %v280, 7
    %v282 = vsub.s32 2, %v281
    %v283 = vrot.slane %v70, %v282
    %v284 = vmul.f32 %v268, %v279
    %v285 = vmul.f32 %v275, %v283
    %v286 = vadd.f32 %v260, %v284
    %v287 = vadd.f32 %v261, %v285
    %v288 = vlaneseq
    %v289 = vshrl.u32 %v288, 7
    %v290 = vsub.s32 3, %v289
    %v291 = vrot.slane %v179, %v290
    %293 = vbcast.lane.b32.xlu0 %v291, 256
    %v294 = vpop.permute.xlu0 %293
    %v295 = vlaneseq
    %v296 = vshrl.u32 %v295, 7
    %v297 = vsub.s32 3, %v296
    %v298 = vrot.slane %v180, %v297
    %300 = vbcast.lane.b32.xlu0 %v298, 256
    %v301 = vpop.permute.xlu0 %300
    %v302 = vlaneseq
    %v303 = vshrl.u32 %v302, 7
    %v304 = vsub.s32 3, %v303
    %v305 = vrot.slane %v69, %v304
    %v306 = vlaneseq
    %v307 = vshrl.u32 %v306, 7
    %v308 = vsub.s32 3, %v307
    %v309 = vrot.slane %v70, %v308
    %v310 = vmul.f32 %v294, %v305
    %v311 = vmul.f32 %v301, %v309
    %v312 = vadd.f32 %v286, %v310
    %v313 = vadd.f32 %v287, %v311
    %v314 = vlaneseq
    %v315 = vshrl.u32 %v314, 7
    %v316 = vsub.s32 4, %v315
    %v317 = vrot.slane %v179, %v316
    %319 = vbcast.lane.b32.xlu0 %v317, 256
    %v320 = vpop.permute.xlu0 %319
    %v321 = vlaneseq
    %v322 = vshrl.u32 %v321, 7
    %v323 = vsub.s32 4, %v322
    %v324 = vrot.slane %v180, %v323
    %326 = vbcast.lane.b32.xlu0 %v324, 256
    %v327 = vpop.permute.xlu0 %326
    %v328 = vlaneseq
    %v329 = vshrl.u32 %v328, 7
    %v330 = vsub.s32 4, %v329
    %v331 = vrot.slane %v69, %v330
    %v332 = vlaneseq
    %v333 = vshrl.u32 %v332, 7
    %v334 = vsub.s32 4, %v333
    %v335 = vrot.slane %v70, %v334
    %v336 = vmul.f32 %v320, %v331
    %v337 = vmul.f32 %v327, %v335
    %v338 = vadd.f32 %v312, %v336
    %v339 = vadd.f32 %v313, %v337
    %v340 = vlaneseq
    %v341 = vshrl.u32 %v340, 7
    %v342 = vsub.s32 5, %v341
    %v343 = vrot.slane %v179, %v342
    %345 = vbcast.lane.b32.xlu0 %v343, 256
    %v346 = vpop.permute.xlu0 %345
    %v347 = vlaneseq
    %v348 = vshrl.u32 %v347, 7
    %v349 = vsub.s32 5, %v348
    %v350 = vrot.slane %v180, %v349
    %352 = vbcast.lane.b32.xlu0 %v350, 256
    %v353 = vpop.permute.xlu0 %352
    %v354 = vlaneseq
    %v355 = vshrl.u32 %v354, 7
    %v356 = vsub.s32 5, %v355
    %v357 = vrot.slane %v69, %v356
    %v358 = vlaneseq
    %v359 = vshrl.u32 %v358, 7
    %v360 = vsub.s32 5, %v359
    %v361 = vrot.slane %v70, %v360
    %v362 = vmul.f32 %v346, %v357
    %v363 = vmul.f32 %v353, %v361
    %v364 = vadd.f32 %v338, %v362
    %v365 = vadd.f32 %v339, %v363
    %v366 = vlaneseq
    %v367 = vshrl.u32 %v366, 7
    %v368 = vsub.s32 6, %v367
    %v369 = vrot.slane %v179, %v368
    %371 = vbcast.lane.b32.xlu0 %v369, 256
    %v372 = vpop.permute.xlu0 %371
    %v373 = vlaneseq
    %v374 = vshrl.u32 %v373, 7
    %v375 = vsub.s32 6, %v374
    %v376 = vrot.slane %v180, %v375
    %378 = vbcast.lane.b32.xlu0 %v376, 256
    %v379 = vpop.permute.xlu0 %378
    %v380 = vlaneseq
    %v381 = vshrl.u32 %v380, 7
    %v382 = vsub.s32 6, %v381
    %v383 = vrot.slane %v69, %v382
    %v384 = vlaneseq
    %v385 = vshrl.u32 %v384, 7
    %v386 = vsub.s32 6, %v385
    %v387 = vrot.slane %v70, %v386
    %v388 = vmul.f32 %v372, %v383
    %v389 = vmul.f32 %v379, %v387
    %v390 = vadd.f32 %v364, %v388
    %v391 = vadd.f32 %v365, %v389
    %v392 = vlaneseq
    %v393 = vshrl.u32 %v392, 7
    %v394 = vsub.s32 7, %v393
    %v395 = vrot.slane %v179, %v394
    %397 = vbcast.lane.b32.xlu0 %v395, 256
    %v398 = vpop.permute.xlu0 %397
    %v399 = vlaneseq
    %v400 = vshrl.u32 %v399, 7
    %v401 = vsub.s32 7, %v400
    %v402 = vrot.slane %v180, %v401
    %404 = vbcast.lane.b32.xlu0 %v402, 256
    %v405 = vpop.permute.xlu0 %404
    %v406 = vlaneseq
    %v407 = vshrl.u32 %v406, 7
    %v408 = vsub.s32 7, %v407
    %v409 = vrot.slane %v69, %v408
    %v410 = vlaneseq
    %v411 = vshrl.u32 %v410, 7
    %v412 = vsub.s32 7, %v411
    %v413 = vrot.slane %v70, %v412
    %v414 = vmul.f32 %v398, %v409
    %v415 = vmul.f32 %v405, %v413
    %v416 = vadd.f32 %v390, %v414
    %v417 = vadd.f32 %v391, %v415
    %419 = vbcast.lane.b32.xlu0 %v202, 256
    %v420 = vpop.permute.xlu0 %419
    %422 = vbcast.lane.b32.xlu0 %v209, 256
    %v423 = vpop.permute.xlu0 %422
    %v424 = vmul.f32 %v420, %v72
    %v425 = vmul.f32 %v423, %v72
    %v426 = vsub.f32 %v416, %v424
    %v427 = vsub.f32 %v417, %v425
    %v428 = vmul.f32 %v426, %v426
    %v429 = vmul.f32 %v427, %v427
    %430 = vadd.xlane.f32.xlu0 %v428
    %v431 = vpop.xlane.xlu0 %430
    %432 = vadd.xlane.f32.xlu0 %v429
    %v433 = vpop.xlane.xlu0 %432
    %v434 = vmax.f32 %v431, 1e-24
    %v435 = vmax.f32 %v433, 1e-24
    %v436 = vrsqrt.pop %v434
    %v437 = vrsqrt.pop %v435
    %v438 = vmul.f32 %v426, %v436
    %v439 = vmul.f32 %v427, %v437
    %v440 = vmul.f32 %v438, %v73
    %v441 = vmul.f32 %v439, %v73
    %v442 = vadd.f32 %v440, %v74
    %v443 = vadd.f32 %v441, %v74
    %v444 = vmul.f32 %v442, %v442
    %v445 = vmul.f32 %v443, %v443
    %446 = vadd.xlane.f32.xlu0 %v444
    %v447 = vpop.xlane.xlu0 %446
    %448 = vadd.xlane.f32.xlu0 %v445
    %v449 = vpop.xlane.xlu0 %448
    %v450 = vrot.slane %v447, 4
    %v451 = vadd.f32 %v447, %v450
    %v452 = vrot.slane %v451, 2
    %v453 = vadd.f32 %v451, %v452
    %v454 = vrot.slane %v453, 1
    %v455 = vadd.f32 %v453, %v454
    %v456 = vrot.slane %v449, 4
    %v457 = vadd.f32 %v449, %v456
    %v458 = vrot.slane %v457, 2
    %v459 = vadd.f32 %v457, %v458
    %v460 = vrot.slane %v459, 1
    %v461 = vadd.f32 %v459, %v460
    %v462 = vmax.f32 %v455, 1e-24
    %v463 = vmax.f32 %v461, 1e-24
    %v464 = vrsqrt.pop %v462
    %v465 = vrsqrt.pop %v463
    %v466 = vmul.f32 %v442, %v464
    %v467 = vmul.f32 %v443, %v465
    %468 = vst [vmem:[#allocation8] sm:$0xff] %v466
    %469 = vst [vmem:[#allocation8 + $0x8] sm:$0xff] %v467
    // Predicated region
    $region26: #{tpu_custom_call.1} parent=1 // pred_check
      _
    $region27: #{tpu_custom_call.1} parent=1 // pred_check_branch
      %471 = sbr.rel (0) target = $region29
    $region28: #{tpu_custom_call.1} parent=1 // pred_region
      %s473 = ssub.s32 256, 256
      %474 = vsyncadd [#allocation4], %s473
      %s475 = sshll.u32 [#allocation8], 4
      %s476 = int_to_ptr.vmem [resolvable:$true] %s475
      %481 = dma.vmem_to_hbm [thread:$0]  %s476, 256, %s3, [#allocation4], 128, 128, 8
    $region29: #{tpu_custom_call.1} parent=1 // pred_fallthru
      _
    // Predicated region
    $region30: #{tpu_custom_call.1} parent=1 // pred_check
      _
    $region31: #{tpu_custom_call.1} parent=1 // pred_check_branch
      %483 = sbr.rel (0) target = $region33
    $region32: #{tpu_custom_call.1} parent=1 // pred_region
      %484 = dma.done [#allocation4], 256
    $region33: #{tpu_custom_call.1} parent=1 // pred_fallthru
      _
    %485 = vsyncpa [#allocation3], 1
    %486 = vsyncpa [#allocation6], 1
    %487 = vsyncpa [#allocation4], 1

</llo_original>
